<compile_context>
chip_gen: v5e
topology: v5e:2x2
jax: 0.10.0
libtpu: 0.0.40
codegen_flags: <defaults>
</compile_context>

<pallas_src>
import jax
import jax.numpy as jnp
from jax.experimental import pallas as pl
from jax.experimental.pallas import tpu as pltpu


def _round_up(x, m):
    return (x + m - 1) // m * m


def _recognition_kernel(x_ref, w_ref, b_ref, out_ref):
    # One grid step: (tile_b, d_in_p) x (d_in_p, n_out_p) -> (tile_b, n_out_p)
    # Single fused matmul for both heads; bias broadcast-add; one wide store.
    acc = jnp.dot(x_ref[...], w_ref[...], preferred_element_type=jnp.float32)
    out_ref[...] = (acc + b_ref[...]).astype(out_ref.dtype)


def _pick_tile_b(batch, d_in_p, n_out_p, itemsize,
                 vmem_budget_bytes=24 * 1024 * 1024):
    """Largest multiple-of-8 row tile whose double-buffered x/out tiles plus the
    resident fused weight fit a conservative VMEM budget (safe on v7x's 64 MiB)."""
    resident = 2 * (d_in_p * n_out_p + n_out_p) * itemsize      # weight + bias (2 bufs)
    avail = max(vmem_budget_bytes - resident, 1 << 20)
    per_row = 2 * (d_in_p + n_out_p) * itemsize                 # double-buffered x + out row
    tile = (avail // per_row) // 8 * 8
    tile = max(8, min(tile, 1024))
    b8 = _round_up(batch, 8)
    tile = min(tile, b8)
    # Prefer >= 2 grid steps along the parallel batch axis (v7x: 2 TCs/chip).
    if b8 >= 16 and tile >= b8:
        tile = max(8, _round_up(b8 // 2, 8))
    return tile


def recognition_network(x, w_mean, b_mean, w_logvar, b_logvar, *, tile_b=None):
    """Compute (mean, logvar) = (x @ w_mean + b_mean, x @ w_logvar + b_logvar).

    x:        (B, d_in)
    w_*:      (d_in, d_out)   -- transposed relative to torch.nn.Linear.weight
    b_*:      (d_out,)
    returns:  ((B, d_out), (B, d_out))
    """
    B, d_in = x.shape
    d_out = w_mean.shape[1]
    dtype = x.dtype
    itemsize = jnp.dtype(dtype).itemsize

    # --- Fuse the two heads and pad to lane-dense shapes (multiples of 128). ---
    n_out = 2 * d_out
    d_in_p = _round_up(d_in, 128)
    n_out_p = _round_up(n_out, 128)

    w_cat = jnp.concatenate([w_mean, w_logvar], axis=1)           # (d_in, 2*d_out)
    w_cat = jnp.pad(w_cat, ((0, d_in_p - d_in), (0, n_out_p - n_out)))
    b_cat = jnp.concatenate([b_mean, b_logvar], axis=0)           # (2*d_out,)
    b_cat = jnp.pad(b_cat, (0, n_out_p - n_out)).reshape(1, n_out_p)

    # --- Pick a VMEM-budgeted batch tile and pad the batch to a whole grid. ---
    if tile_b is None:
        tile_b = _pick_tile_b(B, d_in_p, n_out_p, itemsize)
    tile_b = max(8, _round_up(tile_b, 8))
    B_p = _round_up(max(B, tile_b), tile_b)

    x_p = jnp.pad(x, ((0, B_p - B), (0, d_in_p - d_in)))

    grid = (pl.cdiv(B_p, tile_b),)

    # TODO(synk): for large d_in/d_out, cast x/w_cat to bfloat16 here (keeping the
    # f32 accumulation inside the kernel) to hit bf16 MXU peak on v6e/v7x.
    fused = pl.pallas_call(
        _recognition_kernel,
        out_shape=jax.ShapeDtypeStruct((B_p, n_out_p), dtype),
        grid_spec=pltpu.PrefetchScalarGridSpec(
            num_scalar_prefetch=0,
            grid=grid,
            in_specs=[
                pl.BlockSpec((tile_b, d_in_p), lambda i: (i, 0)),   # x tile
                pl.BlockSpec((d_in_p, n_out_p), lambda i: (0, 0)),  # fused weight (resident)
                pl.BlockSpec((1, n_out_p), lambda i: (0, 0)),       # fused bias
            ],
            out_specs=pl.BlockSpec((tile_b, n_out_p), lambda i: (i, 0)),
        ),
        compiler_params=pltpu.CompilerParams(
            dimension_semantics=("parallel",),
        ),
    )(x_p, w_cat, b_cat)

    mean = fused[:B, :d_out]
    logvar = fused[:B, d_out:n_out]
    return mean, logvar


def init_recognition_params(key, d_in, d_out, dtype=jnp.float32):
    """Deterministic init mimicking nn.Linear default: U(-1/sqrt(d_in), 1/sqrt(d_in))."""
    k1, k2, k3, k4 = jax.random.split(key, 4)
    bound = 1.0 / jnp.sqrt(jnp.asarray(d_in, dtype=jnp.float32))
    w_mean = jax.random.uniform(k1, (d_in, d_out), dtype, -bound, bound)
    b_mean = jax.random.uniform(k2, (d_out,), dtype, -bound, bound)
    w_logvar = jax.random.uniform(k3, (d_in, d_out), dtype, -bound, bound)
    b_logvar = jax.random.uniform(k4, (d_out,), dtype, -bound, bound)
    return w_mean, b_mean, w_logvar, b_logvar


if __name__ == "__main__":
    # Small shapes consistent with RecognitionNetwork(d_in, d_out); B=16 gives a
    # 2-step parallel grid so both v7x TensorCores get work.
    B, d_in, d_out = 16, 32, 32

    key = jax.random.PRNGKey(0)
    kx, kp = jax.random.split(key)
    x = jax.random.normal(kx, (B, d_in), jnp.float32)
    w_mean, b_mean, w_logvar, b_logvar = init_recognition_params(kp, d_in, d_out)

    mean, logvar = recognition_network(x, w_mean, b_mean, w_logvar, b_logvar)
    jax.block_until_ready((mean, logvar))

    # Pure-JAX reference check.
    ref_mean = x @ w_mean + b_mean
    ref_logvar = x @ w_logvar + b_logvar
    assert mean.shape == (B, d_out) and logvar.shape == (B, d_out)
    assert jnp.allclose(mean, ref_mean, atol=1e-5, rtol=1e-5)
    assert jnp.allclose(logvar, ref_logvar, atol=1e-5, rtol=1e-5)

    print("KERNEL_OK")
</pallas_src>

<mosaic_0001>
module attributes {stable_mosaic.version = 11 : i64} {
  func.func @_recognition_kernel(%arg0: i32, %arg1: memref<8x128xf32, #tpu.memory_space<vmem>>, %arg2: memref<128x128xf32, #tpu.memory_space<vmem>>, %arg3: memref<1x128xf32, #tpu.memory_space<vmem>>, %arg4: memref<8x128xf32, #tpu.memory_space<vmem>>) attributes {dimension_semantics = [#tpu.dimension_semantics<parallel>], iteration_bounds = array<i64: 2>, scalar_prefetch = 0 : i64, scratch_operands = 0 : i64, tpu.core_type = #tpu.core_type<tc>, window_params = [{transform_indices = @transform_0, window_bounds = array<i64: 8, 128>}, {pipeline_mode = #tpu.pipeline_mode<synchronous>, transform_indices = @transform_1, window_bounds = array<i64: 128, 128>}, {pipeline_mode = #tpu.pipeline_mode<synchronous>, transform_indices = @transform_2, window_bounds = array<i64: 1, 128>}, {transform_indices = @transform_3, window_bounds = array<i64: 8, 128>}]} {
    %c0 = arith.constant 0 : index
    %c0_0 = arith.constant 0 : index
    %0 = vector.load %arg1[%c0, %c0_0] : memref<8x128xf32, #tpu.memory_space<vmem>>, vector<8x128xf32>
    %c0_1 = arith.constant 0 : index
    %c0_2 = arith.constant 0 : index
    %1 = vector.load %arg2[%c0_1, %c0_2] : memref<128x128xf32, #tpu.memory_space<vmem>>, vector<128x128xf32>
    %cst = arith.constant dense<0.000000e+00> : vector<8x128xf32>
    %2 = tpu.matmul %0, %1, %cst {dimension_numbers = #tpu.dot_dimension_numbers<[1], [0], [0], [1], [0, 0, 1, 1], [], []>} : vector<8x128xf32>, vector<128x128xf32>, vector<8x128xf32> -> vector<8x128xf32>
    %c0_3 = arith.constant 0 : index
    %c0_4 = arith.constant 0 : index
    %3 = vector.load %arg3[%c0_3, %c0_4] : memref<1x128xf32, #tpu.memory_space<vmem>>, vector<1x128xf32>
    %4 = vector.broadcast %3 : vector<1x128xf32> to vector<8x128xf32>
    %5 = arith.addf %2, %4 : vector<8x128xf32>
    %c0_5 = arith.constant 0 : index
    %c0_6 = arith.constant 0 : index
    %6 = vector.load %arg4[%c0_5, %c0_6] : memref<8x128xf32, #tpu.memory_space<vmem>>, vector<8x128xf32>
    tpu.vector_store %arg4[%c0_5, %c0_6], %5 {strides = array<i32>} : memref<8x128xf32, #tpu.memory_space<vmem>>, vector<8x128xf32>,
    return
  }
  func.func @transform_0(%arg0: i32) -> (i32, i32) {
    %c0_i32 = arith.constant 0 : i32
    %c0_i32_0 = arith.constant 0 : i32
    return %arg0, %c0_i32 : i32, i32
  }
  func.func @transform_1(%arg0: i32) -> (i32, i32) {
    %c0_i32 = arith.constant 0 : i32
    %c0_i32_0 = arith.constant 0 : i32
    %c0_i32_1 = arith.constant 0 : i32
    return %c0_i32, %c0_i32_0 : i32, i32
  }
  func.func @transform_2(%arg0: i32) -> (i32, i32) {
    %c0_i32 = arith.constant 0 : i32
    %c0_i32_0 = arith.constant 0 : i32
    %c0_i32_1 = arith.constant 0 : i32
    return %c0_i32, %c0_i32_0 : i32, i32
  }
  func.func @transform_3(%arg0: i32) -> (i32, i32) {
    %c0_i32 = arith.constant 0 : i32
    %c0_i32_0 = arith.constant 0 : i32
    return %arg0, %c0_i32 : i32, i32
  }
}

</mosaic_0001>

<llo_original>
// kernel: tpu_custom_call.1
$region0: #{tpu_custom_call.1}
  #allocation0 [shape = 'u32[]', space=smem, size = 0x4, offset = 0x4, fixed_abs, tag = 'smem constant byte address 0x4 - core index']
  #allocation1 [shape = 'u32[72,128]{1,0:T(1,128)}', space=vmem, size = 0x9000, scoped, tag = 'internal scratch']
  %s0 = inlined_call_operand.hbm [shape: f32[16,128], index: 0, kind: input, shape index: {}]
  %s1 = inlined_call_operand.hbm [shape: f32[128,128], index: 1, kind: input, shape index: {}]
  %s2 = inlined_call_operand.vmem [shape: f32[1,128], index: 2, kind: input, shape index: {}]
  %s3 = inlined_call_operand.hbm [shape: f32[16,128], index: 3, kind: output, shape index: {}]
  %s4 = sld [smem:[#allocation0]]
  $region53: #{tpu_custom_call.1} parent=0
    _
  %s6 = ssub.s32 1, %s4
  %s7 = scalar_select 0, %s6, %s4
  $region1: #{tpu_custom_call.1} parent=0
    #allocation2 [shape = 'u8[8192]{0}', space=vmem, size = 0x2000, scoped, tag = 'input window, operand 0']
    #allocation3 [shape = 's32[2]{0}', space=sflag, size = 0x8, scoped, tag = 'scoped memory for tpu_custom_call.1']
    #allocation4 [shape = 's32[2]{0}', space=sflag, size = 0x8, scoped, tag = 'scoped memory for tpu_custom_call.1']
    #allocation5 [shape = 'u8[65536]{0}', space=vmem, size = 0x10000, scoped, tag = 'input window, operand 1, single buffered']
    #allocation6 [shape = 's32[1]{0}', space=sflag, size = 0x4, scoped, tag = 'scoped memory for tpu_custom_call.1']
    #allocation7 [shape = 'u8[8192]{0}', space=vmem, size = 0x2000, scoped, tag = 'output window, operand 0']
    %8 = vsyncpa [#allocation3], 0
    %s9 = scalar_lea.sflag [#allocation3], 1
    %10 = vsyncpa %s9, 0
    %11 = vsyncpa [#allocation6], 0
    %12 = vsyncpa [#allocation4], 0
    %s13 = scalar_lea.sflag [#allocation4], 1
    %14 = vsyncpa %s13, 0
    loop: start=0, step=1, limit=4
    $region2: #{tpu_custom_call.1} parent=1 // loop_pre_header
      _
    $region3: #{tpu_custom_call.1} parent=1 // loop_header
      %s16 = sphi 0, %s20
      %p17 = scmp.ge.s32.totalorder %s16, 4
      %s26 = sphi 0, %s28
      %s29 = sphi 0, %s26
      %s30 = sphi 0, %s29
      %s46 = sphi 0, %s30
      %s50 = sphi 0, %s50
      %s52 = sphi 0, %s50
      %s53 = sphi 0, %s52
      %s67 = sphi 0, %s53
      %s71 = sphi 0, %s71
      %s73 = sphi 0, %s71
      %s74 = sphi 0, %s73
      %s88 = sphi 0, %s74
      %s94 = sphi 0, %s96
      %s97 = sphi 0, %s94
      %s98 = sphi 0, %s97
      %s114 = sphi 0, %s98
    $region4: #{tpu_custom_call.1} parent=1 // loop_header_branch
      %19 = sbr.rel (%p17) target = $region8
    $region5: #{tpu_custom_call.1} parent=1 // loop_body
      %s21 = ssub.s32 %s16, 1
      %s22 = ssub.s32 %s16, 2
      %s23 = sadd.s32 %s16, 1
      %s24 = ssub.s32 %s16, %s23
      %p25 = scmp.eq.s32.totalorder %s24, 0
      %s27 = sadd.s32 %s26, 1
      %s28 = scalar_select %p25, %s26, %s27
      %p31 = pneg %p25
      %p32 = scmp.eq.s32.totalorder %s16, 1
      %p33 = por %p31, %p32
      %p34 = scmp.ne.s32.totalorder %s26, %s29
      %p35 = scmp.eq.s32.totalorder %s16, 0
      %p36 = por %p34, %p35
      %p37 = scmp.ne.s32.totalorder %s26, %s29
      %p38 = scmp.eq.s32.totalorder %s21, 1
      %p39 = por %p37, %p38
      %p40 = scmp.ne.s32.totalorder %s29, %s30
      %p41 = scmp.eq.s32.totalorder %s21, 0
      %p42 = por %p40, %p41
      %p43 = scmp.ne.s32.totalorder %s29, %s30
      %p44 = scmp.eq.s32.totalorder %s22, 1
      %p45 = por %p43, %p44
      %p47 = scmp.ne.s32.totalorder %s30, %s46
      %p48 = scmp.eq.s32.totalorder %s22, 0
      %p49 = por %p47, %p48
      %s51 = sadd.s32 %s50, 1
      %p54 = scmp.eq.s32.totalorder %s16, 1
      %p55 = scmp.ne.s32.totalorder %s50, %s52
      %p56 = scmp.eq.s32.totalorder %s16, 0
      %p57 = por %p55, %p56
      %p58 = scmp.ne.s32.totalorder %s50, %s52
      %p59 = scmp.eq.s32.totalorder %s21, 1
      %p60 = por %p58, %p59
      %p61 = scmp.ne.s32.totalorder %s52, %s53
      %p62 = scmp.eq.s32.totalorder %s21, 0
      %p63 = por %p61, %p62
      %p64 = scmp.ne.s32.totalorder %s52, %s53
      %p65 = scmp.eq.s32.totalorder %s22, 1
      %p66 = por %p64, %p65
      %p68 = scmp.ne.s32.totalorder %s53, %s67
      %p69 = scmp.eq.s32.totalorder %s22, 0
      %p70 = por %p68, %p69
      %s72 = sadd.s32 %s71, 1
      %p75 = scmp.eq.s32.totalorder %s16, 1
      %p76 = scmp.ne.s32.totalorder %s71, %s73
      %p77 = scmp.eq.s32.totalorder %s16, 0
      %p78 = por %p76, %p77
      %p79 = scmp.ne.s32.totalorder %s71, %s73
      %p80 = scmp.eq.s32.totalorder %s21, 1
      %p81 = por %p79, %p80
      %p82 = scmp.ne.s32.totalorder %s73, %s74
      %p83 = scmp.eq.s32.totalorder %s21, 0
      %p84 = por %p82, %p83
      %p85 = scmp.ne.s32.totalorder %s73, %s74
      %p86 = scmp.eq.s32.totalorder %s22, 1
      %p87 = por %p85, %p86
      %p89 = scmp.ne.s32.totalorder %s74, %s88
      %p90 = scmp.eq.s32.totalorder %s22, 0
      %p91 = por %p89, %p90
      %s92 = ssub.s32 %s16, %s23
      %p93 = scmp.eq.s32.totalorder %s92, 0
      %s95 = sadd.s32 %s94, 1
      %s96 = scalar_select %p93, %s94, %s95
      %p99 = pneg %p93
      %p100 = scmp.eq.s32.totalorder %s16, 1
      %p101 = por %p99, %p100
      %p102 = scmp.ne.s32.totalorder %s94, %s97
      %p103 = scmp.eq.s32.totalorder %s16, 0
      %p104 = por %p102, %p103
      %p105 = scmp.ne.s32.totalorder %s94, %s97
      %p106 = scmp.eq.s32.totalorder %s21, 1
      %p107 = por %p105, %p106
      %p108 = scmp.ne.s32.totalorder %s97, %s98
      %p109 = scmp.eq.s32.totalorder %s21, 0
      %p110 = por %p108, %p109
      %p111 = scmp.ne.s32.totalorder %s97, %s98
      %p112 = scmp.eq.s32.totalorder %s22, 1
      %p113 = por %p111, %p112
      %p115 = scmp.ne.s32.totalorder %s98, %s114
      %p116 = scmp.eq.s32.totalorder %s22, 0
      %p117 = por %p115, %p116
      %p118 = scmp.le.s32.totalorder 1, %s16
      %p119 = scmp.lt.s32.totalorder %s16, 3
      %p120 = pnand %p118, %p119
      %p121 = pneg %p120
      // Predicated region
      $region9: #{tpu_custom_call.1} parent=5 // pred_check
        _
      $region10: #{tpu_custom_call.1} parent=5 // pred_check_branch
        %123 = sbr.rel (%p120) target = $region12
      $region11: #{tpu_custom_call.1} parent=5 // pred_region
        %s124 = ssub.s32 %s16, 1
        // Predicated region
        $region13: #{tpu_custom_call.1} parent=11 // pred_check
          %p125 = pneg %p63
        $region14: #{tpu_custom_call.1} parent=11 // pred_check_branch
          %127 = sbr.rel (%p125) target = $region16
        $region15: #{tpu_custom_call.1} parent=11 // pred_region
          %129 = vsyncadd [#allocation6], 0
          %s130 = sshll.u32 %s1, 4
          %s131 = int_to_ptr.hbm [resolvable:$true] %s130
          %s132 = sshll.u32 [#allocation5], 4
          %s133 = int_to_ptr.vmem [resolvable:$true] %s132
          %138 = dma.hbm_to_vmem [thread:$0]  %s131, 2048, %s133, [#allocation6], 128, 128, 8
        $region16: #{tpu_custom_call.1} parent=11 // pred_fallthru
          _
        // Predicated region
        $region17: #{tpu_custom_call.1} parent=11 // pred_check
          %p139 = pneg %p84
        $region18: #{tpu_custom_call.1} parent=11 // pred_check_branch
          %141 = sbr.rel (%p139) target = $region20
        $region19: #{tpu_custom_call.1} parent=11 // pred_region
          _
        $region20: #{tpu_custom_call.1} parent=11 // pred_fallthru
          _
      $region12: #{tpu_custom_call.1} parent=5 // pred_fallthru
        _
      %p142 = scmp.lt.s32.totalorder %s16, 2
      // Predicated region
      $region21: #{tpu_custom_call.1} parent=5 // pred_check
        %p143 = pneg %p142
      $region22: #{tpu_custom_call.1} parent=5 // pred_check_branch
        %145 = sbr.rel (%p143) target = $region24
      $region23: #{tpu_custom_call.1} parent=5 // pred_region
        // Predicated region
        $region25: #{tpu_custom_call.1} parent=23 // pred_check
          %p146 = pneg %p36
        $region26: #{tpu_custom_call.1} parent=23 // pred_check_branch
          %148 = sbr.rel (%p146) target = $region28
        $region27: #{tpu_custom_call.1} parent=23 // pred_region
          %s149 = sand.u32 %s26, 1
          %s150 = scalar_lea.sflag [#allocation3], %s149
          %s151 = sand.u32 %s26, 1
          %s152 = smul.addr %s151, 8
          %s153 = scalar_lea.vmem [#allocation2], %s152
          %155 = vsyncadd %s150, 0
          %s156 = smul.addr %s16, 8
          %s157 = scalar_lea.hbm %s0, %s156
          %s159 = sshll.u32 %s157, 4
          %s160 = int_to_ptr.hbm [resolvable:$true] %s159
          %s161 = sshll.u32 %s153, 4
          %s162 = int_to_ptr.vmem [resolvable:$true] %s161
          %164 = dma.hbm_to_vmem [thread:$0]  %s160, 128, %s162, %s150
        $region28: #{tpu_custom_call.1} parent=23 // pred_fallthru
          _
      $region24: #{tpu_custom_call.1} parent=5 // pred_fallthru
        _
      %p165 = scmp.le.s32.totalorder 1, %s16
      %p166 = scmp.lt.s32.totalorder %s16, 3
      %p167 = pnand %p165, %p166
      %p168 = pneg %p167
      // Predicated region
      $region29: #{tpu_custom_call.1} parent=5 // pred_check
        _
      $region30: #{tpu_custom_call.1} parent=5 // pred_check_branch
        %170 = sbr.rel (%p167) target = $region32
      $region31: #{tpu_custom_call.1} parent=5 // pred_region
        %s171 = ssub.s32 %s16, 1
        %s172 = sand.u32 %s29, 1
        %s173 = scalar_lea.sflag [#allocation3], %s172
        %s174 = sand.u32 %s29, 1
        %s175 = smul.addr %s174, 8
        %s176 = scalar_lea.vmem [#allocation2], %s175
        // Predicated region
        $region33: #{tpu_custom_call.1} parent=31 // pred_check
          %p177 = pneg %p42
        $region34: #{tpu_custom_call.1} parent=31 // pred_check_branch
          %179 = sbr.rel (%p177) target = $region36
        $region35: #{tpu_custom_call.1} parent=31 // pred_region
          %181 = dma.done %s173, 128
        $region36: #{tpu_custom_call.1} parent=31 // pred_fallthru
          _
        // Predicated region
        $region37: #{tpu_custom_call.1} parent=31 // pred_check
          %p182 = pneg %p63
        $region38: #{tpu_custom_call.1} parent=31 // pred_check_branch
          %184 = sbr.rel (%p182) target = $region40
        $region39: #{tpu_custom_call.1} parent=31 // pred_region
          %186 = dma.done [#allocation6], 2048
        $region40: #{tpu_custom_call.1} parent=31 // pred_fallthru
          _
        %s187 = sand.u32 %s29, 1
        %s188 = scalar_lea.sflag [#allocation3], %s187
        %s189 = sand.u32 %s29, 1
        %s190 = smul.addr %s189, 8
        %s191 = scalar_lea.vmem [#allocation2], %s190
        %p192 = pneg %p42
        %p193 = pneg %p39
        %p194 = pneg %p63
        %p195 = pneg %p60
        %p196 = pneg %p84
        %p197 = pneg %p81
        %p198 = pneg %p110
        %p199 = pneg %p107
        %s200 = sand.u32 %s97, 1
        %s201 = scalar_lea.sflag [#allocation4], %s200
        %s202 = sand.u32 %s97, 1
        %s203 = smul.addr %s202, 8
        %s204 = scalar_lea.vmem [#allocation7], %s203
        %v205 = vld [vmem:[%s176] sm:$0xff]
        %v206 = vld [vmem:[#allocation5] sm:$0xff]
        %v207 = vld [vmem:[#allocation5 + $0x8] sm:$0xff]
        %v208 = vld [vmem:[#allocation5 + $0x10] sm:$0xff]
        %v209 = vld [vmem:[#allocation5 + $0x18] sm:$0xff]
        %v210 = vld [vmem:[#allocation5 + $0x20] sm:$0xff]
        %v211 = vld [vmem:[#allocation5 + $0x28] sm:$0xff]
        %v212 = vld [vmem:[#allocation5 + $0x30] sm:$0xff]
        %v213 = vld [vmem:[#allocation5 + $0x38] sm:$0xff]
        %v214 = vld [vmem:[#allocation5 + $0x40] sm:$0xff]
        %v215 = vld [vmem:[#allocation5 + $0x48] sm:$0xff]
        %v216 = vld [vmem:[#allocation5 + $0x50] sm:$0xff]
        %v217 = vld [vmem:[#allocation5 + $0x58] sm:$0xff]
        %v218 = vld [vmem:[#allocation5 + $0x60] sm:$0xff]
        %v219 = vld [vmem:[#allocation5 + $0x68] sm:$0xff]
        %v220 = vld [vmem:[#allocation5 + $0x70] sm:$0xff]
        %v221 = vld [vmem:[#allocation5 + $0x78] sm:$0xff]
        %v222 = vld [vmem:[%s2] sm:$0x1]
        %v224 = vperm.slane %v222, 0
        %226 = vmatpush.msra.mxu0 %v221
        %227 = vmatpush.msra.mxu0 %v220
        %228 = vmatpush.msra.mxu0 %v219
        %229 = vmatpush.msra.mxu0 %v218
        %230 = vmatpush.msra.mxu0 %v217
        %231 = vmatpush.msra.mxu0 %v216
        %232 = vmatpush.msra.mxu0 %v215
        %233 = vmatpush.msra.mxu0 %v214
        %234 = vmatpush.msra.mxu0 %v213
        %235 = vmatpush.msra.mxu0 %v212
        %236 = vmatpush.msra.mxu0 %v211
        %237 = vmatpush.msra.mxu0 %v210
        %238 = vmatpush.msra.mxu0 %v209
        %239 = vmatpush.msra.mxu0 %v208
        %240 = vmatpush.msra.mxu0 %v207
        %241 = vmatpush.msra.mxu0 %v206
        %242 = vmatmul.f32.gmra.mxu0 %v205
        %v243 = vpop.f32.mrf.mxu0
        %v244 = vadd.f32 %v224, %v243
        %245 = vdwg.mxu0
        %246 = vst [vmem:[%s204] sm:$0xff] %v244
        %s247 = sand.u32 %s97, 1
        %s248 = scalar_lea.sflag [#allocation4], %s247
        %s249 = sand.u32 %s97, 1
        %s250 = smul.addr %s249, 8
        %s251 = scalar_lea.vmem [#allocation7], %s250
        // Predicated region
        $region41: #{tpu_custom_call.1} parent=31 // pred_check
          %p252 = pneg %p107
        $region42: #{tpu_custom_call.1} parent=31 // pred_check_branch
          %254 = sbr.rel (%p252) target = $region44
        $region43: #{tpu_custom_call.1} parent=31 // pred_region
          %256 = vsyncadd %s248, 0
          %s257 = smul.addr %s21, 8
          %s258 = scalar_lea.hbm %s3, %s257
          %s260 = sshll.u32 %s251, 4
          %s261 = int_to_ptr.vmem [resolvable:$true] %s260
          %s262 = sshll.u32 %s258, 4
          %s263 = int_to_ptr.hbm [resolvable:$true] %s262
          %265 = dma.vmem_to_hbm [thread:$0]  %s261, 128, %s263, %s248
        $region44: #{tpu_custom_call.1} parent=31 // pred_fallthru
          _
      $region32: #{tpu_custom_call.1} parent=5 // pred_fallthru
        _
      %p266 = scmp.le.s32.totalorder 2, %s16
      // Predicated region
      $region45: #{tpu_custom_call.1} parent=5 // pred_check
        %p267 = pneg %p266
      $region46: #{tpu_custom_call.1} parent=5 // pred_check_branch
        %269 = sbr.rel (%p267) target = $region48
      $region47: #{tpu_custom_call.1} parent=5 // pred_region
        %s270 = ssub.s32 %s16, 2
        // Predicated region
        $region49: #{tpu_custom_call.1} parent=47 // pred_check
          %p271 = pneg %p113
        $region50: #{tpu_custom_call.1} parent=47 // pred_check_branch
          %273 = sbr.rel (%p271) target = $region52
        $region51: #{tpu_custom_call.1} parent=47 // pred_region
          %s274 = sand.u32 %s98, 1
          %s275 = scalar_lea.sflag [#allocation4], %s274
          %s276 = sand.u32 %s98, 1
          %s277 = smul.addr %s276, 8
          %s278 = scalar_lea.vmem [#allocation7], %s277
          %280 = dma.done %s275, 128
        $region52: #{tpu_custom_call.1} parent=47 // pred_fallthru
          _
      $region48: #{tpu_custom_call.1} parent=5 // pred_fallthru
        _
    $region6: #{tpu_custom_call.1} parent=1 // loop_footer
      %s20 = sadd.s32 1, %s16
    $region7: #{tpu_custom_call.1} parent=1 // loop_footer_branch
      %15 = sbr.rel target = $region3
    $region8: #{tpu_custom_call.1} parent=1 // loop_exit
      _
    %281 = vsyncpa [#allocation3], 1
    %s282 = scalar_lea.sflag [#allocation3], 1
    %283 = vsyncpa %s282, 1
    %284 = vsyncpa [#allocation6], 1
    %285 = vsyncpa [#allocation4], 1
    %s286 = scalar_lea.sflag [#allocation4], 1
    %287 = vsyncpa %s286, 1

</llo_original>
